<compile_context>
chip_gen: v7x
topology: tpu7x:2x2x1
jax: 0.10.0
libtpu: 0.0.40
codegen_flags: <defaults>
</compile_context>

<pallas_src>
import math
from functools import partial

import jax
import jax.numpy as jnp
from jax import lax
from jax.experimental import pallas as pl
from jax.experimental.pallas import tpu as pltpu


def _round_up(x, m):
    return ((x + m - 1) // m) * m


def _vmem_limit_bytes():
    # Generation-aware VMEM limit: ~75% of physical (96 MiB on v5e/v6e, 48 MiB on v7x).
    try:
        cap = int(pltpu.get_tpu_info().vmem_capacity_bytes)
    except Exception:
        cap = 64 * 1024 * 1024          # conservative fallback (v7x-sized)
    return min(int(cap * 3 // 4), 112 * 1024 * 1024)


# ----------------------------------------------------------------------------
# Phase 0: batched input-side gate matmul  gi = x @ W_i + b_comb   (parallel)
# ----------------------------------------------------------------------------
def _gi_kernel(x_ref, wi_ref, b_ref, gi_ref):
    gi_ref[...] = (jnp.dot(x_ref[...], wi_ref[...],
                           preferred_element_type=jnp.float32) + b_ref[...])


# ----------------------------------------------------------------------------
# Phase 1: GRU recurrence — one MXU matmul per step (h @ W_h)
# grid = (batch_blocks "parallel", time_blocks "arbitrary")
# ----------------------------------------------------------------------------
def _gru_kernel(gi_ref, h0_ref, wh_ref, bhn_ref, hs_ref, hfin_ref, h_carry,
                *, seq_len, t_blk):
    t_idx = pl.program_id(1)
    n_t = pl.num_programs(1)

    # Initialize the carried hidden state at the start of each batch block's sweep.
    @pl.when(t_idx == 0)
    def _():
        h_carry[...] = h0_ref[0].astype(jnp.float32)

    T = gi_ref.shape[0]              # timesteps in this block (static)
    B = h_carry.shape[0]
    H = h_carry.shape[-1]

    # Hoist the bias broadcast out of the unrolled loop (JAX doesn't CSE broadcasts).
    bhn = jnp.broadcast_to(bhn_ref[...], (B, H))        # (B, H) f32

    ragged = (seq_len % t_blk) != 0

    def step(t, h):
        gi = gi_ref[t]                                                # (B, 3H) f32
        # Single per-step MXU matmul; f32 accumulation (gate math stays f32 -> v5e ok).
        gh = jnp.dot(h.astype(jnp.bfloat16), wh_ref[...],
                     preferred_element_type=jnp.float32)              # (B, 3H) f32
        # PyTorch GRU semantics (b_ir+b_hr, b_iz+b_hz, b_in already folded into gi):
        r = jax.nn.sigmoid(gi[:, 0:H] + gh[:, 0:H])
        z = jax.nn.sigmoid(gi[:, H:2 * H] + gh[:, H:2 * H])
        n = jnp.tanh(gi[:, 2 * H:3 * H] + r * (gh[:, 2 * H:3 * H] + bhn))
        h_new = (1.0 - z) * n + z * h
        if ragged:                    # masked tail for padded timesteps (static check)
            valid = (t_idx * t_blk + t) < seq_len
            h_new = jnp.where(valid, h_new, h)
        hs_ref[t] = h_new.astype(hs_ref.dtype)                        # emit h_t (bf16)
        return h_new

    h_last = lax.fori_loop(0, T, step, h_carry[...], unroll=min(T, 8))
    h_carry[...] = h_last

    # Final hidden state: written once per batch block, on the last time block.
    @pl.when(t_idx == n_t - 1)
    def _():
        hfin_ref[0] = h_last.astype(hfin_ref.dtype)


# ----------------------------------------------------------------------------
# Phase 2a: vocab-tiled online logsumexp     grid = (row_blocks, vocab_blocks)
# ----------------------------------------------------------------------------
def _lse_kernel(h_ref, w_ref, b_ref, lse_ref, m_sc, l_sc):
    j = pl.program_id(1)

    @pl.when(j == 0)
    def _():
        m_sc[...] = jnp.full(m_sc.shape, -jnp.inf, dtype=m_sc.dtype)
        l_sc[...] = jnp.zeros(l_sc.shape, dtype=l_sc.dtype)

    logits = jnp.dot(h_ref[...], w_ref[...],
                     preferred_element_type=jnp.float32) + b_ref[...]   # (TM, TV)
    m_prev = m_sc[...]
    m_new = jnp.maximum(m_prev, jnp.max(logits, axis=-1, keepdims=True))
    l_sc[...] = (l_sc[...] * jnp.exp(m_prev - m_new)
                 + jnp.sum(jnp.exp(logits - m_new), axis=-1, keepdims=True))
    m_sc[...] = m_new

    @pl.when(j == pl.num_programs(1) - 1)
    def _():
        lse_ref[...] = m_sc[...] + jnp.log(l_sc[...])


# ----------------------------------------------------------------------------
# Phase 2b: vocab-tiled log-probs            grid = (row_blocks, vocab_blocks)
# ----------------------------------------------------------------------------
def _logp_kernel(h_ref, w_ref, b_ref, lse_ref, logp_ref):
    logits = jnp.dot(h_ref[...], w_ref[...],
                     preferred_element_type=jnp.float32) + b_ref[...]
    # TODO(synk): emit bf16 (or fuse the NLL target-gather) to halve HBM writeback on v6e/v5e.
    logp_ref[...] = (logits - lse_ref[...]).astype(logp_ref.dtype)


# ----------------------------------------------------------------------------
# Parameter preparation: pad / fuse / transpose PyTorch-layout params (done once)
# ----------------------------------------------------------------------------
def make_params(key, hidden_size, vocab_size):
    """Raw parameters with exactly nn.Embedding / nn.GRU / nn.Linear layouts."""
    H, V = hidden_size, vocab_size
    ks = jax.random.split(key, 8)
    bound = 1.0 / math.sqrt(H)
    u = lambda k, shape: jax.random.uniform(k, shape, jnp.float32, -bound, bound)
    return dict(
        embedding=jax.random.normal(ks[0], (V, H), jnp.float32),   # nn.Embedding
        w_ih=u(ks[1], (3 * H, H)), w_hh=u(ks[2], (3 * H, H)),      # nn.GRU (r|z|n)
        b_ih=u(ks[3], (3 * H,)), b_hh=u(ks[4], (3 * H,)),
        w_out=u(ks[5], (V, H)), b_out=u(ks[6], (V,)),              # nn.Linear
    )


def prepare_params(raw, *, tv_blk=512):
    """Pad H to 128-multiple, fuse+transpose GRU gates, pad vocab; bf16 weights."""
    V, H = raw["embedding"].shape
    Hp = _round_up(H, 128)
    TV = min(tv_blk, _round_up(V, 128))
    Vp = _round_up(V, TV)

    def fuse(w):                       # (3H, H) torch layout -> (Hp, 3Hp), x @ W layout
        gates = jnp.split(w, 3, axis=0)
        gates = [jnp.pad(g.T, ((0, Hp - H), (0, Hp - H))) for g in gates]
        return jnp.concatenate(gates, axis=1)

    b_ih = jnp.split(raw["b_ih"], 3)
    b_hh = jnp.split(raw["b_hh"], 3)
    pad_h = lambda v: jnp.pad(v, (0, Hp - H))
    # r/z biases fold into the precomputed gi; only b_hn stays inside the recurrence.
    b_comb = jnp.concatenate([pad_h(b_ih[0] + b_hh[0]),
                              pad_h(b_ih[1] + b_hh[1]),
                              pad_h(b_ih[2])])[None, :]                  # (1, 3Hp) f32
    b_hn = pad_h(b_hh[2])[None, :]                                       # (1, Hp)  f32

    emb = jnp.pad(raw["embedding"], ((0, 0), (0, Hp - H))).astype(jnp.bfloat16)
    w_out = jnp.pad(raw["w_out"].T, ((0, Hp - H), (0, Vp - V))).astype(jnp.bfloat16)
    # Padded vocab entries get a huge negative bias so they vanish from the softmax.
    b_out = jnp.pad(raw["b_out"], (0, Vp - V), constant_values=-1e30)[None, :]

    return dict(embedding=emb,
                w_i=fuse(raw["w_ih"]).astype(jnp.bfloat16),
                w_h=fuse(raw["w_hh"]).astype(jnp.bfloat16),
                b_comb=b_comb, b_hn=b_hn, w_out=w_out, b_out=b_out,
                H=H, V=V, H_pad=Hp, V_pad=Vp, tv=TV)


# ----------------------------------------------------------------------------
# Forward pass
# ----------------------------------------------------------------------------
def decoder_forward(prev_word, hidden_state, prepped, *, t_blk=32, b_blk=16, m_blk=256):
    """prev_word: (S, B) int32; hidden_state: (1, B, H) f32."""
    S, B = prev_word.shape
    H, V = prepped["H"], prepped["V"]
    Hp, Vp, TV = prepped["H_pad"], prepped["V_pad"], prepped["tv"]
    vmem_limit = _vmem_limit_bytes()

    # ---- padding (lane/sublane alignment; no divisor search, just cdiv + pad) ----
    T_BLK = min(t_blk, S)
    S_pad = _round_up(S, T_BLK)
    B_BLK = b_blk                                      # multiple of 16 -> bf16 sublane-dense
    B_pad = _round_up(B, B_BLK)

    pw = jnp.pad(prev_word, ((0, S_pad - S), (0, B_pad - B)))
    h0 = jnp.pad(hidden_state.astype(jnp.float32),
                 ((0, 0), (0, B_pad - B), (0, Hp - H)))

    # Embedding lookup (gather) stays in JAX glue.
    # TODO(synk): move the gather into Phase 0 via scalar-prefetched token ids + a
    # pl.Element row-gather BlockSpec on the embedding table to avoid the HBM round trip.
    x_emb = prepped["embedding"][pw]                                    # (S_pad, B_pad, Hp) bf16

    # ---------------- Phase 0: gi = x @ W_i + b_comb (parallel, MXU-filling) ----------------
    M0 = S_pad * B_pad
    x_rows = x_emb.reshape(M0, Hp)
    TM0 = min(512, _round_up(M0, 16))
    M0_pad = _round_up(M0, TM0)
    if M0_pad != M0:
        x_rows = jnp.pad(x_rows, ((0, M0_pad - M0), (0, 0)))

    gi_rows = pl.pallas_call(
        _gi_kernel,
        out_shape=jax.ShapeDtypeStruct((M0_pad, 3 * Hp), jnp.float32),
        grid_spec=pltpu.PrefetchScalarGridSpec(
            num_scalar_prefetch=0,
            grid=(M0_pad // TM0,),
            in_specs=[
                pl.BlockSpec((TM0, Hp), lambda i: (i, 0)),
                # TODO(synk): pipeline_mode=pl.Buffered(1) on the constant-index weight/bias
                # specs would reclaim a duplicated buffer on v7x's 64 MiB VMEM.
                pl.BlockSpec((Hp, 3 * Hp), lambda i: (0, 0)),
                pl.BlockSpec((1, 3 * Hp), lambda i: (0, 0)),
            ],
            out_specs=pl.BlockSpec((TM0, 3 * Hp), lambda i: (i, 0)),
        ),
        compiler_params=pltpu.CompilerParams(
            dimension_semantics=("parallel",), vmem_limit_bytes=vmem_limit),
    )(x_rows, prepped["w_i"], prepped["b_comb"])
    gi = gi_rows[:M0].reshape(S_pad, B_pad, 3 * Hp)

    # ---------------- Phase 1: GRU recurrence (batch parallel x time arbitrary) ----------------
    hs, h_fin = pl.pallas_call(
        partial(_gru_kernel, seq_len=S, t_blk=T_BLK),
        out_shape=(
            jax.ShapeDtypeStruct((S_pad, B_pad, Hp), jnp.bfloat16),   # all hidden states
            jax.ShapeDtypeStruct((1, B_pad, Hp), jnp.float32),        # final hidden state
        ),
        grid_spec=pltpu.PrefetchScalarGridSpec(
            num_scalar_prefetch=0,
            grid=(B_pad // B_BLK, S_pad // T_BLK),
            in_specs=[
                pl.BlockSpec((T_BLK, B_BLK, 3 * Hp), lambda b, t: (t, b, 0)),   # gi block
                pl.BlockSpec((1, B_BLK, Hp), lambda b, t: (0, b, 0)),           # h0 block
                pl.BlockSpec((Hp, 3 * Hp), lambda b, t: (0, 0)),                # W_h (fused r|z|n)
                pl.BlockSpec((1, Hp), lambda b, t: (0, 0)),                     # b_hn
            ],
            out_specs=[
                pl.BlockSpec((T_BLK, B_BLK, Hp), lambda b, t: (t, b, 0)),       # h_t outputs
                pl.BlockSpec((1, B_BLK, Hp), lambda b, t: (0, b, 0)),           # final hidden
            ],
            scratch_shapes=[pltpu.VMEM((B_BLK, Hp), jnp.float32)],              # carried hidden
        ),
        compiler_params=pltpu.CompilerParams(
            dimension_semantics=("parallel", "arbitrary"),
            vmem_limit_bytes=vmem_limit),
    )(gi, h0, prepped["w_h"], prepped["b_hn"])

    # ---------------- Phase 2: vocab-tiled projection + two-pass log-softmax ----------------
    h_rows = hs.reshape(M0, Hp)                                          # bf16 (S_pad*B_pad, Hp)
    TM = min(m_blk, _round_up(M0, 16))
    M_pad = _round_up(M0, TM)
    if M_pad != M0:
        h_rows = jnp.pad(h_rows, ((0, M_pad - M0), (0, 0)))

    row_vocab_grid = (M_pad // TM, Vp // TV)
    h_spec = pl.BlockSpec((TM, Hp), lambda i, j: (i, 0))
    w_spec = pl.BlockSpec((Hp, TV), lambda i, j: (0, j))
    b_spec = pl.BlockSpec((1, TV), lambda i, j: (0, j))
    lse_spec = pl.BlockSpec((TM, 1), lambda i, j: (i, 0))

    lse = pl.pallas_call(
        _lse_kernel,
        out_shape=jax.ShapeDtypeStruct((M_pad, 1), jnp.float32),
        grid_spec=pltpu.PrefetchScalarGridSpec(
            num_scalar_prefetch=0,
            grid=row_vocab_grid,
            in_specs=[h_spec, w_spec, b_spec],
            out_specs=lse_spec,
            scratch_shapes=[pltpu.VMEM((TM, 1), jnp.float32),
                            pltpu.VMEM((TM, 1), jnp.float32)],
        ),
        compiler_params=pltpu.CompilerParams(
            dimension_semantics=("parallel", "arbitrary"),
            vmem_limit_bytes=vmem_limit),
    )(h_rows, prepped["w_out"], prepped["b_out"])

    logp_flat = pl.pallas_call(
        _logp_kernel,
        out_shape=jax.ShapeDtypeStruct((M_pad, Vp), jnp.float32),
        grid_spec=pltpu.PrefetchScalarGridSpec(
            num_scalar_prefetch=0,
            grid=row_vocab_grid,
            in_specs=[h_spec, w_spec, b_spec, lse_spec],
            out_specs=pl.BlockSpec((TM, TV), lambda i, j: (i, j)),      # lane-dense output
        ),
        compiler_params=pltpu.CompilerParams(
            dimension_semantics=("parallel", "parallel"),
            vmem_limit_bytes=vmem_limit),
    )(h_rows, prepped["w_out"], prepped["b_out"], lse)

    logp = logp_flat[:M0].reshape(S_pad, B_pad, Vp)[:S, :B, :V]
    h_out = h_fin[:, :B, :H]
    return logp, h_out


# ----------------------------------------------------------------------------
# Pure-JAX reference (PyTorch-faithful f32 GRU + Linear + LogSoftmax)
# ----------------------------------------------------------------------------
def decoder_reference(prev_word, hidden_state, raw):
    H = hidden_state.shape[-1]
    emb = raw["embedding"][prev_word]                                    # (S, B, H) f32

    def step(h, x):
        gi = x @ raw["w_ih"].T + raw["b_ih"]
        gh = h @ raw["w_hh"].T + raw["b_hh"]
        r = jax.nn.sigmoid(gi[:, 0:H] + gh[:, 0:H])
        z = jax.nn.sigmoid(gi[:, H:2 * H] + gh[:, H:2 * H])
        n = jnp.tanh(gi[:, 2 * H:3 * H] + r * gh[:, 2 * H:3 * H])
        h_new = (1.0 - z) * n + z * h
        return h_new, h_new

    h_last, outs = lax.scan(step, hidden_state[0], emb)
    logits = outs @ raw["w_out"].T + raw["b_out"]
    logp = jax.nn.log_softmax(logits, axis=2)
    return logp, h_last[None]


if __name__ == "__main__":
    S, B, H, V = 4, 8, 32, 128     # seq, batch, hidden_size, vocab_size

    key = jax.random.PRNGKey(0)
    k_param, k_word, k_hidden = jax.random.split(key, 3)

    raw = make_params(k_param, H, V)
    prepped = prepare_params(raw)
    prev_word = jax.random.randint(k_word, (S, B), 0, V, dtype=jnp.int32)
    hidden_state = jax.random.normal(k_hidden, (1, B, H), jnp.float32)

    logp, h_out = decoder_forward(prev_word, hidden_state, prepped)
    jax.block_until_ready((logp, h_out))

    logp_ref, h_ref = decoder_reference(prev_word, hidden_state, raw)
    assert logp.shape == (S, B, V) and h_out.shape == (1, B, H)
    assert jnp.allclose(logp, logp_ref, atol=2e-2, rtol=2e-2), \
        float(jnp.max(jnp.abs(logp - logp_ref)))
    assert jnp.allclose(h_out, h_ref, atol=2e-2, rtol=2e-2), \
        float(jnp.max(jnp.abs(h_out - h_ref)))

    print("KERNEL_OK")
</pallas_src>

<mosaic_0001>
module attributes {stable_mosaic.version = 11 : i64} {
  func.func @_gi_kernel(%arg0: i32, %arg1: memref<64x128xbf16, #tpu.memory_space<vmem>>, %arg2: memref<128x384xbf16, #tpu.memory_space<vmem>>, %arg3: memref<1x384xf32, #tpu.memory_space<vmem>>, %arg4: memref<64x384xf32, #tpu.memory_space<vmem>>) attributes {dimension_semantics = [#tpu.dimension_semantics<parallel>], iteration_bounds = array<i64: 1>, scalar_prefetch = 0 : i64, scratch_operands = 0 : i64, tpu.core_type = #tpu.core_type<tc>, window_params = [{transform_indices = @transform_0, window_bounds = array<i64: 64, 128>}, {pipeline_mode = #tpu.pipeline_mode<synchronous>, transform_indices = @transform_1, window_bounds = array<i64: 128, 384>}, {pipeline_mode = #tpu.pipeline_mode<synchronous>, transform_indices = @transform_2, window_bounds = array<i64: 1, 384>}, {transform_indices = @transform_3, window_bounds = array<i64: 64, 384>}]} {
    %c0 = arith.constant 0 : index
    %c0_0 = arith.constant 0 : index
    %0 = vector.load %arg1[%c0, %c0_0] : memref<64x128xbf16, #tpu.memory_space<vmem>>, vector<64x128xbf16>
    %c0_1 = arith.constant 0 : index
    %c0_2 = arith.constant 0 : index
    %1 = vector.load %arg2[%c0_1, %c0_2] : memref<128x384xbf16, #tpu.memory_space<vmem>>, vector<128x384xbf16>
    %cst = arith.constant dense<0.000000e+00> : vector<64x384xf32>
    %2 = tpu.matmul %0, %1, %cst {dimension_numbers = #tpu.dot_dimension_numbers<[1], [0], [0], [1], [0, 0, 1, 1], [], []>} : vector<64x128xbf16>, vector<128x384xbf16>, vector<64x384xf32> -> vector<64x384xf32>
    %c0_3 = arith.constant 0 : index
    %c0_4 = arith.constant 0 : index
    %3 = vector.load %arg3[%c0_3, %c0_4] : memref<1x384xf32, #tpu.memory_space<vmem>>, vector<1x384xf32>
    %4 = vector.broadcast %3 : vector<1x384xf32> to vector<64x384xf32>
    %5 = arith.addf %2, %4 : vector<64x384xf32>
    %c0_5 = arith.constant 0 : index
    %c0_6 = arith.constant 0 : index
    %6 = vector.load %arg4[%c0_5, %c0_6] : memref<64x384xf32, #tpu.memory_space<vmem>>, vector<64x384xf32>
    tpu.vector_store %arg4[%c0_5, %c0_6], %5 {strides = array<i32>} : memref<64x384xf32, #tpu.memory_space<vmem>>, vector<64x384xf32>,
    return
  }
  func.func @transform_0(%arg0: i32) -> (i32, i32) {
    %c0_i32 = arith.constant 0 : i32
    %c0_i32_0 = arith.constant 0 : i32
    return %arg0, %c0_i32 : i32, i32
  }
  func.func @transform_1(%arg0: i32) -> (i32, i32) {
    %c0_i32 = arith.constant 0 : i32
    %c0_i32_0 = arith.constant 0 : i32
    %c0_i32_1 = arith.constant 0 : i32
    return %c0_i32, %c0_i32_0 : i32, i32
  }
  func.func @transform_2(%arg0: i32) -> (i32, i32) {
    %c0_i32 = arith.constant 0 : i32
    %c0_i32_0 = arith.constant 0 : i32
    %c0_i32_1 = arith.constant 0 : i32
    return %c0_i32, %c0_i32_0 : i32, i32
  }
  func.func @transform_3(%arg0: i32) -> (i32, i32) {
    %c0_i32 = arith.constant 0 : i32
    %c0_i32_0 = arith.constant 0 : i32
    return %arg0, %c0_i32 : i32, i32
  }
}

</mosaic_0001>

<llo_original>
// kernel: tpu_custom_call.1
$region0: #{tpu_custom_call.1}
  #allocation0 [shape = 'u32[]', space=smem, size = 0x4, offset = 0x4, fixed_abs, tag = 'smem constant byte address 0x4 - core index']
  #allocation1 [shape = 'u32[144,128]{1,0:T(1,128)}', space=vmem, size = 0x12000, scoped, tag = 'internal scratch']
  %s0 = inlined_call_operand.hbm [shape: bf16[64,128], index: 0, kind: input, shape index: {}]
  %s1 = inlined_call_operand.hbm [shape: bf16[128,384], index: 1, kind: input, shape index: {}]
  %s2 = inlined_call_operand.vmem [shape: f32[1,384], index: 2, kind: input, shape index: {}]
  %s3 = inlined_call_operand.hbm [shape: f32[64,384], index: 3, kind: output, shape index: {}]
  %s4 = sld [smem:[#allocation0]]
  $region30: #{tpu_custom_call.1} parent=0
    _
  %s6 = ssub.s32 1, %s4
  %s7 = scalar_select 0, %s6, %s4
  $region1: #{tpu_custom_call.1} parent=0
    #allocation2 [shape = 'u8[16384]{0}', space=vmem, size = 0x4000, scoped, tag = 'input window, operand 0, single buffered']
    #allocation3 [shape = 's32[1]{0}', space=sflag, size = 0x4, scoped, tag = 'scoped memory for tpu_custom_call.1']
    #allocation4 [shape = 's32[1]{0}', space=sflag, size = 0x4, scoped, tag = 'scoped memory for tpu_custom_call.1']
    #allocation5 [shape = 'u8[98304]{0}', space=vmem, size = 0x18000, scoped, tag = 'input window, operand 1, single buffered']
    #allocation6 [shape = 's32[1]{0}', space=sflag, size = 0x4, scoped, tag = 'scoped memory for tpu_custom_call.1']
    #allocation7 [shape = 'u8[98304]{0}', space=vmem, size = 0x18000, scoped, tag = 'output window, operand 0, single buffered']
    %8 = vsyncpa [#allocation3], 0
    %9 = vsyncpa [#allocation6], 0
    %10 = vsyncpa [#allocation4], 0
    // Predicated region
    $region2: #{tpu_custom_call.1} parent=1 // pred_check
      _
    $region3: #{tpu_custom_call.1} parent=1 // pred_check_branch
      %12 = sbr.rel (0) target = $region5
    $region4: #{tpu_custom_call.1} parent=1 // pred_region
      %s14 = ssub.s32 512, 512
      %15 = vsyncadd [#allocation3], %s14
      %s16 = sshll.u32 [#allocation2], 4
      %s17 = int_to_ptr.vmem [resolvable:$true] %s16
      %22 = dma.hbm_to_vmem [thread:$0]  %s0, 512, %s17, [#allocation3], 64, 64, 4
    $region5: #{tpu_custom_call.1} parent=1 // pred_fallthru
      _
    // Predicated region
    $region6: #{tpu_custom_call.1} parent=1 // pred_check
      _
    $region7: #{tpu_custom_call.1} parent=1 // pred_check_branch
      %24 = sbr.rel (0) target = $region9
    $region8: #{tpu_custom_call.1} parent=1 // pred_region
      %s26 = ssub.s32 3072, 3072
      %27 = vsyncadd [#allocation6], %s26
      %s28 = sshll.u32 [#allocation5], 4
      %s29 = int_to_ptr.vmem [resolvable:$true] %s28
      %34 = dma.hbm_to_vmem [thread:$0]  %s1, 3072, %s29, [#allocation6], 192, 192, 12
    $region9: #{tpu_custom_call.1} parent=1 // pred_fallthru
      _
    // Predicated region
    $region10: #{tpu_custom_call.1} parent=1 // pred_check
      _
    $region11: #{tpu_custom_call.1} parent=1 // pred_check_branch
      %36 = sbr.rel (0) target = $region13
    $region12: #{tpu_custom_call.1} parent=1 // pred_region
      _
    $region13: #{tpu_custom_call.1} parent=1 // pred_fallthru
      _
    // Predicated region
    $region14: #{tpu_custom_call.1} parent=1 // pred_check
      _
    $region15: #{tpu_custom_call.1} parent=1 // pred_check_branch
      %38 = sbr.rel (0) target = $region17
    $region16: #{tpu_custom_call.1} parent=1 // pred_region
      %39 = dma.done [#allocation3], 512
    $region17: #{tpu_custom_call.1} parent=1 // pred_fallthru
      _
    // Predicated region
    $region18: #{tpu_custom_call.1} parent=1 // pred_check
      _
    $region19: #{tpu_custom_call.1} parent=1 // pred_check_branch
      %41 = sbr.rel (0) target = $region21
    $region20: #{tpu_custom_call.1} parent=1 // pred_region
      %42 = dma.done [#allocation6], 3072
    $region21: #{tpu_custom_call.1} parent=1 // pred_fallthru
      _
    %v44 = vld [vmem:[#allocation2] sm:$0xf]
    %v45 = vld [vmem:[#allocation2 + $0x4] sm:$0xf]
    %v46 = vld [vmem:[#allocation2 + $0x8] sm:$0xf]
    %v47 = vld [vmem:[#allocation2 + $0xc] sm:$0xf]
    %v48 = vld [vmem:[#allocation2 + $0x10] sm:$0xf]
    %v49 = vld [vmem:[#allocation2 + $0x14] sm:$0xf]
    %v50 = vld [vmem:[#allocation2 + $0x18] sm:$0xf]
    %v51 = vld [vmem:[#allocation2 + $0x1c] sm:$0xf]
    %v52 = vld [vmem:[#allocation5] sm:$0xff]
    %v53 = vld [vmem:[#allocation5 + $0x8] sm:$0xf]
    %v54 = vld [vmem:[#allocation5 + $0xc] sm:$0xff]
    %v55 = vld [vmem:[#allocation5 + $0x14] sm:$0xf]
    %v56 = vld [vmem:[#allocation5 + $0x18] sm:$0xff]
    %v57 = vld [vmem:[#allocation5 + $0x20] sm:$0xf]
    %v58 = vld [vmem:[#allocation5 + $0x24] sm:$0xff]
    %v59 = vld [vmem:[#allocation5 + $0x2c] sm:$0xf]
    %v60 = vld [vmem:[#allocation5 + $0x30] sm:$0xff]
    %v61 = vld [vmem:[#allocation5 + $0x38] sm:$0xf]
    %v62 = vld [vmem:[#allocation5 + $0x3c] sm:$0xff]
    %v63 = vld [vmem:[#allocation5 + $0x44] sm:$0xf]
    %v64 = vld [vmem:[#allocation5 + $0x48] sm:$0xff]
    %v65 = vld [vmem:[#allocation5 + $0x50] sm:$0xf]
    %v66 = vld [vmem:[#allocation5 + $0x54] sm:$0xff]
    %v67 = vld [vmem:[#allocation5 + $0x5c] sm:$0xf]
    %v68 = vld [vmem:[#allocation5 + $0x60] sm:$0xff]
    %v69 = vld [vmem:[#allocation5 + $0x68] sm:$0xf]
    %v70 = vld [vmem:[#allocation5 + $0x6c] sm:$0xff]
    %v71 = vld [vmem:[#allocation5 + $0x74] sm:$0xf]
    %v72 = vld [vmem:[#allocation5 + $0x78] sm:$0xff]
    %v73 = vld [vmem:[#allocation5 + $0x80] sm:$0xf]
    %v74 = vld [vmem:[#allocation5 + $0x84] sm:$0xff]
    %v75 = vld [vmem:[#allocation5 + $0x8c] sm:$0xf]
    %v76 = vld [vmem:[#allocation5 + $0x90] sm:$0xff]
    %v77 = vld [vmem:[#allocation5 + $0x98] sm:$0xf]
    %v78 = vld [vmem:[#allocation5 + $0x9c] sm:$0xff]
    %v79 = vld [vmem:[#allocation5 + $0xa4] sm:$0xf]
    %v80 = vld [vmem:[#allocation5 + $0xa8] sm:$0xff]
    %v81 = vld [vmem:[#allocation5 + $0xb0] sm:$0xf]
    %v82 = vld [vmem:[#allocation5 + $0xb4] sm:$0xff]
    %v83 = vld [vmem:[#allocation5 + $0xbc] sm:$0xf]
    %v84 = vld [vmem:[%s2] sm:$0x7]
    %v86 = vlaneseq
    %v87 = vshrl.u32 %v86, 7
    %v88 = vsub.s32 0, %v87
    %v89 = vrot.slane %v84, %v88
    %v90 = vlaneseq
    %v91 = vshrl.u32 %v90, 7
    %v92 = vsub.s32 1, %v91
    %v93 = vrot.slane %v84, %v92
    %v94 = vlaneseq
    %v95 = vshrl.u32 %v94, 7
    %v96 = vsub.s32 2, %v95
    %v97 = vrot.slane %v84, %v96
    %v109 = vunpack.c.l.b16 %v44
    %v110 = vunpack.c.l.b16 %v45
    %v111 = vunpack.c.l.b16 %v46
    %v112 = vunpack.c.l.b16 %v47
    %v113 = vunpack.c.l.b16 %v48
    %v114 = vunpack.c.l.b16 %v49
    %v115 = vunpack.c.l.b16 %v50
    %v116 = vunpack.c.l.b16 %v51
    %v117 = vpack.c.b16 %v110, %v109
    %v118 = vpack.c.b16 %v112, %v111
    %v119 = vpack.c.b16 %v114, %v113
    %v120 = vpack.c.b16 %v116, %v115
    %v157 = vunpack.c.l.b16 %v52
    %v158 = vunpack.c.h.b16 %v52
    %v159 = vunpack.c.l.b16 %v53
    %v160 = vunpack.c.l.b16 %v54
    %v161 = vunpack.c.h.b16 %v54
    %v162 = vunpack.c.l.b16 %v55
    %v163 = vunpack.c.l.b16 %v56
    %v164 = vunpack.c.h.b16 %v56
    %v165 = vunpack.c.l.b16 %v57
    %v166 = vunpack.c.l.b16 %v58
    %v167 = vunpack.c.h.b16 %v58
    %v168 = vunpack.c.l.b16 %v59
    %v169 = vunpack.c.l.b16 %v60
    %v170 = vunpack.c.h.b16 %v60
    %v171 = vunpack.c.l.b16 %v61
    %v172 = vunpack.c.l.b16 %v62
    %v173 = vunpack.c.h.b16 %v62
    %v174 = vunpack.c.l.b16 %v63
    %v175 = vunpack.c.l.b16 %v64
    %v176 = vunpack.c.h.b16 %v64
    %v177 = vunpack.c.l.b16 %v65
    %v178 = vunpack.c.l.b16 %v66
    %v179 = vunpack.c.h.b16 %v66
    %v180 = vunpack.c.l.b16 %v67
    %v181 = vunpack.c.l.b16 %v68
    %v182 = vunpack.c.h.b16 %v68
    %v183 = vunpack.c.l.b16 %v69
    %v184 = vunpack.c.l.b16 %v70
    %v185 = vunpack.c.h.b16 %v70
    %v186 = vunpack.c.l.b16 %v71
    %v187 = vunpack.c.l.b16 %v72
    %v188 = vunpack.c.h.b16 %v72
    %v189 = vunpack.c.l.b16 %v73
    %v190 = vunpack.c.l.b16 %v74
    %v191 = vunpack.c.h.b16 %v74
    %v192 = vunpack.c.l.b16 %v75
    %v193 = vunpack.c.l.b16 %v76
    %v194 = vunpack.c.h.b16 %v76
    %v195 = vunpack.c.l.b16 %v77
    %v196 = vunpack.c.l.b16 %v78
    %v197 = vunpack.c.h.b16 %v78
    %v198 = vunpack.c.l.b16 %v79
    %v199 = vunpack.c.l.b16 %v80
    %v200 = vunpack.c.h.b16 %v80
    %v201 = vunpack.c.l.b16 %v81
    %v202 = vunpack.c.l.b16 %v82
    %v203 = vunpack.c.h.b16 %v82
    %v204 = vunpack.c.l.b16 %v83
    %v205 = vpack.c.b16 %v160, %v157
    %v206 = vpack.c.b16 %v161, %v158
    %v207 = vpack.c.b16 %v162, %v159
    %v208 = vpack.c.b16 %v166, %v163
    %v209 = vpack.c.b16 %v167, %v164
    %v210 = vpack.c.b16 %v168, %v165
    %v211 = vpack.c.b16 %v172, %v169
    %v212 = vpack.c.b16 %v173, %v170
    %v213 = vpack.c.b16 %v174, %v171
    %v214 = vpack.c.b16 %v178, %v175
    %v215 = vpack.c.b16 %v179, %v176
    %v216 = vpack.c.b16 %v180, %v177
    %v217 = vpack.c.b16 %v184, %v181
    %v218 = vpack.c.b16 %v185, %v182
    %v219 = vpack.c.b16 %v186, %v183
    %v220 = vpack.c.b16 %v190, %v187
    %v221 = vpack.c.b16 %v191, %v188
    %v222 = vpack.c.b16 %v192, %v189
    %v223 = vpack.c.b16 %v196, %v193
    %v224 = vpack.c.b16 %v197, %v194
    %v225 = vpack.c.b16 %v198, %v195
    %v226 = vpack.c.b16 %v202, %v199
    %v227 = vpack.c.b16 %v203, %v200
    %v228 = vpack.c.b16 %v204, %v201
    %253 = vmatprep.subr.bf16.mxu0 %v206
    %254 = vmatpush1.bf16.msra.mxu0 %v205
    %255 = vmatprep.subr.bf16.mxu0 %v209
    %256 = vmatpush1.bf16.msra.mxu0 %v208
    %257 = vmatprep.subr.bf16.mxu0 %v212
    %258 = vmatpush1.bf16.msra.mxu0 %v211
    %259 = vmatprep.subr.bf16.mxu0 %v215
    %260 = vmatpush1.bf16.msra.mxu0 %v214
    %261 = vmatprep.subr.bf16.mxu0 %v218
    %262 = vmatpush1.bf16.msra.mxu0 %v217
    %263 = vmatprep.subr.bf16.mxu0 %v221
    %264 = vmatpush1.bf16.msra.mxu0 %v220
    %265 = vmatprep.subr.bf16.mxu0 %v224
    %266 = vmatpush1.bf16.msra.mxu0 %v223
    %267 = vmatprep.subr.bf16.mxu0 %v227
    %268 = vmatpush1.bf16.msra.mxu0 %v226
    %269 = vmatprep.subr.bf16.mxu0 0
    %270 = vmatpush1.bf16.msra.mxu0 0
    %271 = vmatprep.subr.bf16.mxu0 0
    %272 = vmatpush1.bf16.msra.mxu0 0
    %273 = vmatprep.subr.bf16.mxu0 0
    %274 = vmatpush1.bf16.msra.mxu0 0
    %275 = vmatprep.subr.bf16.mxu0 0
    %276 = vmatpush1.bf16.msra.mxu0 0
    %277 = vmatprep.subr.bf16.mxu0 0
    %278 = vmatpush1.bf16.msra.mxu0 0
    %279 = vmatprep.subr.bf16.mxu0 0
    %280 = vmatpush1.bf16.msra.mxu0 0
    %281 = vmatprep.subr.bf16.mxu0 0
    %282 = vmatpush1.bf16.msra.mxu0 0
    %283 = vmatprep.subr.bf16.mxu0 0
    %284 = vmatpush1.bf16.msra.mxu0 0
    %285 = vmatprep.mubr.bf16.mxu0 0
    %286 = vmatmul.mubr.bf16.gmra.mrb[0].mxu0 %v117
    %v287 = vpop.f32.mrb[0].mxu0
    %v288 = vadd.f32 %v89, %v287
    %v289 = vpop.f32.mrb[0].mxu0
    %v290 = vadd.f32 %v93, %v289
    %v291 = vpop.f32.mrb[0].mxu0
    %v292 = vadd.f32 %v89, %v291
    %v293 = vpop.f32.mrb[0].mxu0
    %v294 = vadd.f32 %v93, %v293
    %295 = vmatprep.mubr.bf16.mxu0 0
    %296 = vmatmul.mubr.bf16.gmra.mrb[0].mxu0 %v118
    %v297 = vpop.f32.mrb[0].mxu0
    %v298 = vadd.f32 %v89, %v297
    %v299 = vpop.f32.mrb[0].mxu0
    %v300 = vadd.f32 %v93, %v299
    %v301 = vpop.f32.mrb[0].mxu0
    %v302 = vadd.f32 %v89, %v301
    %v303 = vpop.f32.mrb[0].mxu0
    %v304 = vadd.f32 %v93, %v303
    %305 = vmatprep.mubr.bf16.mxu0 0
    %306 = vmatmul.mubr.bf16.gmra.mrb[0].mxu0 %v119
    %v307 = vpop.f32.mrb[0].mxu0
    %v308 = vadd.f32 %v89, %v307
    %v309 = vpop.f32.mrb[0].mxu0
    %v310 = vadd.f32 %v93, %v309
    %v311 = vpop.f32.mrb[0].mxu0
    %v312 = vadd.f32 %v89, %v311
    %v313 = vpop.f32.mrb[0].mxu0
    %v314 = vadd.f32 %v93, %v313
    %315 = vmatprep.mubr.bf16.mxu0 0
    %316 = vmatmul.mubr.bf16.gmra.mrb[0].mxu0 %v120
    %v317 = vpop.f32.mrb[0].mxu0
    %v318 = vadd.f32 %v89, %v317
    %v319 = vpop.f32.mrb[0].mxu0
    %v320 = vadd.f32 %v93, %v319
    %v321 = vpop.f32.mrb[0].mxu0
    %v322 = vadd.f32 %v89, %v321
    %v323 = vpop.f32.mrb[0].mxu0
    %v324 = vadd.f32 %v93, %v323
    %325 = vdwg.mxu0
    %326 = vmatprep.subr.bf16.mxu0 0
    %327 = vmatpush1.bf16.msra.mxu0 %v207
    %328 = vmatprep.subr.bf16.mxu0 0
    %329 = vmatpush1.bf16.msra.mxu0 %v210
    %330 = vmatprep.subr.bf16.mxu0 0
    %331 = vmatpush1.bf16.msra.mxu0 %v213
    %332 = vmatprep.subr.bf16.mxu0 0
    %333 = vmatpush1.bf16.msra.mxu0 %v216
    %334 = vmatprep.subr.bf16.mxu0 0
    %335 = vmatpush1.bf16.msra.mxu0 %v219
    %336 = vmatprep.subr.bf16.mxu0 0
    %337 = vmatpush1.bf16.msra.mxu0 %v222
    %338 = vmatprep.subr.bf16.mxu0 0
    %339 = vmatpush1.bf16.msra.mxu0 %v225
    %340 = vmatprep.subr.bf16.mxu0 0
    %341 = vmatpush1.bf16.msra.mxu0 %v228
    %342 = vmatprep.subr.bf16.mxu0 0
    %343 = vmatpush1.bf16.msra.mxu0 0
    %344 = vmatprep.subr.bf16.mxu0 0
    %345 = vmatpush1.bf16.msra.mxu0 0
    %346 = vmatprep.subr.bf16.mxu0 0
    %347 = vmatpush1.bf16.msra.mxu0 0
    %348 = vmatprep.subr.bf16.mxu0 0
    %349 = vmatpush1.bf16.msra.mxu0 0
    %350 = vmatprep.subr.bf16.mxu0 0
    %351 = vmatpush1.bf16.msra.mxu0 0
    %352 = vmatprep.subr.bf16.mxu0 0
    %353 = vmatpush1.bf16.msra.mxu0 0
    %354 = vmatprep.subr.bf16.mxu0 0
    %355 = vmatpush1.bf16.msra.mxu0 0
    %356 = vmatprep.subr.bf16.mxu0 0
    %357 = vmatpush1.bf16.msra.mxu0 0
    %358 = vmatprep.mubr.bf16.mxu0 0
    %359 = vmatmul.mubr.bf16.gmra.mrb[0].mxu0 %v117
    %v360 = vpop.f32.mrb[0].mxu0
    %v361 = vadd.f32 %v97, %v360
    %v362 = vpop.f32.mrb[0].mxu0
    %v363 = vpop.f32.mrb[0].mxu0
    %v364 = vadd.f32 %v97, %v363
    %v365 = vpop.f32.mrb[0].mxu0
    %366 = vmatprep.mubr.bf16.mxu0 0
    %367 = vmatmul.mubr.bf16.gmra.mrb[0].mxu0 %v118
    %v368 = vpop.f32.mrb[0].mxu0
    %v369 = vadd.f32 %v97, %v368
    %v370 = vpop.f32.mrb[0].mxu0
    %v371 = vpop.f32.mrb[0].mxu0
    %v372 = vadd.f32 %v97, %v371
    %v373 = vpop.f32.mrb[0].mxu0
    %374 = vmatprep.mubr.bf16.mxu0 0
    %375 = vmatmul.mubr.bf16.gmra.mrb[0].mxu0 %v119
    %v376 = vpop.f32.mrb[0].mxu0
    %v377 = vadd.f32 %v97, %v376
    %v378 = vpop.f32.mrb[0].mxu0
    %v379 = vpop.f32.mrb[0].mxu0
    %v380 = vadd.f32 %v97, %v379
    %v381 = vpop.f32.mrb[0].mxu0
    %382 = vmatprep.mubr.bf16.mxu0 0
    %383 = vmatmul.mubr.bf16.gmra.mrb[0].mxu0 %v120
    %v384 = vpop.f32.mrb[0].mxu0
    %v385 = vadd.f32 %v97, %v384
    %v386 = vpop.f32.mrb[0].mxu0
    %v387 = vpop.f32.mrb[0].mxu0
    %v388 = vadd.f32 %v97, %v387
    %v389 = vpop.f32.mrb[0].mxu0
    %390 = vdwg.mxu0
    %391 = vst [vmem:[#allocation7] sm:$0xff] %v288
    %392 = vst [vmem:[#allocation7 + $0x8] sm:$0xff] %v290
    %393 = vst [vmem:[#allocation7 + $0x10] sm:$0xff] %v361
    %394 = vst [vmem:[#allocation7 + $0x18] sm:$0xff] %v292
    %395 = vst [vmem:[#allocation7 + $0x20] sm:$0xff] %v294
    %396 = vst [vmem:[#allocation7 + $0x28] sm:$0xff] %v364
    %397 = vst [vmem:[#allocation7 + $0x30] sm:$0xff] %v298
    %398 = vst [vmem:[#allocation7 + $0x38] sm:$0xff] %v300
    %399 = vst [vmem:[#allocation7 + $0x40] sm:$0xff] %v369
    %400 = vst [vmem:[#allocation7 + $0x48] sm:$0xff] %v302
    %401 = vst [vmem:[#allocation7 + $0x50] sm:$0xff] %v304
    %402 = vst [vmem:[#allocation7 + $0x58] sm:$0xff] %v372
    %403 = vst [vmem:[#allocation7 + $0x60] sm:$0xff] %v308
    %404 = vst [vmem:[#allocation7 + $0x68] sm:$0xff] %v310
    %405 = vst [vmem:[#allocation7 + $0x70] sm:$0xff] %v377
    %406 = vst [vmem:[#allocation7 + $0x78] sm:$0xff] %v312
    %407 = vst [vmem:[#allocation7 + $0x80] sm:$0xff] %v314
    %408 = vst [vmem:[#allocation7 + $0x88] sm:$0xff] %v380
    %409 = vst [vmem:[#allocation7 + $0x90] sm:$0xff] %v318
    %410 = vst [vmem:[#allocation7 + $0x98] sm:$0xff] %v320
    %411 = vst [vmem:[#allocation7 + $0xa0] sm:$0xff] %v385
    %412 = vst [vmem:[#allocation7 + $0xa8] sm:$0xff] %v322
    %413 = vst [vmem:[#allocation7 + $0xb0] sm:$0xff] %v324
    %414 = vst [vmem:[#allocation7 + $0xb8] sm:$0xff] %v388
    // Predicated region
    $region22: #{tpu_custom_call.1} parent=1 // pred_check
      _
    $region23: #{tpu_custom_call.1} parent=1 // pred_check_branch
      %416 = sbr.rel (0) target = $region25
    $region24: #{tpu_custom_call.1} parent=1 // pred_region
      %s418 = ssub.s32 3072, 3072
      %419 = vsyncadd [#allocation4], %s418
      %s420 = sshll.u32 [#allocation7], 4
      %s421 = int_to_ptr.vmem [resolvable:$true] %s420
      %426 = dma.vmem_to_hbm [thread:$0]  %s421, 3072, %s3, [#allocation4], 384, 384, 24
    $region25: #{tpu_custom_call.1} parent=1 // pred_fallthru
      _
    // Predicated region
    $region26: #{tpu_custom_call.1} parent=1 // pred_check
      _
    $region27: #{tpu_custom_call.1} parent=1 // pred_check_branch
      %428 = sbr.rel (0) target = $region29
    $region28: #{tpu_custom_call.1} parent=1 // pred_region
      %429 = dma.done [#allocation4], 3072
    $region29: #{tpu_custom_call.1} parent=1 // pred_fallthru
      _
    %430 = vsyncpa [#allocation3], 1
    %431 = vsyncpa [#allocation6], 1
    %432 = vsyncpa [#allocation4], 1

</llo_original>
